<compile_context>
chip_gen: v6e
topology: v6e:2x2x1
jax: 0.10.0
libtpu: 0.0.40
codegen_flags: <defaults>
</compile_context>

<pallas_src>
from functools import partial

import jax
import jax.numpy as jnp
from jax.experimental import pallas as pl
from jax.experimental.pallas import tpu as pltpu


def gru_agg_kernel(nodes_ref, edges_ref, mask_ref, w_ref, b_ref, c_ref, out_ref,
                   *, N, D, G):
    """One grid step: G whole batches = G*E edge rows, G*N node/output rows."""
    E = N * N
    D2 = D * D
    R = G * E                                                   # edge rows

    # --- Linear + ReLU on the MXU: (R, F) @ (F, D2), f32 accumulation --------
    A = jnp.dot(edges_ref[...], w_ref[...], preferred_element_type=jnp.float32)
    A = jnp.maximum(A + b_ref[...], 0.0)                        # (R, D2) f32

    # --- node_j[r] = nodes[g*N + j] for r = g*E + i*N + j ---------------------
    # Pure leading-dim broadcast + reshape (lane dim D untouched).
    nodes_b = nodes_ref[...].astype(jnp.float32)                # (G*N, D)
    node_j = jnp.broadcast_to(
        nodes_b.reshape(G, 1, N, D), (G, N, N, D)).reshape(R, D)

    # --- fold the edge mask in early (messages are linear in node_j) ---------
    node_j_m = node_j * mask_ref[...].astype(jnp.float32)       # (R, D)*(R, 1)

    # --- prod[r, d*D + k] = A[r, d*D + k] * node_j_m[r, k] --------------------
    # Lane replication of node_j_m (D copies along lanes), VPU multiply.
    # TODO(synk): if profiling shows XLU saturation, pre-tile nodes to
    # (B*N, D*D) in the wrapper instead of this in-kernel lane replication.
    node_j_rep = jnp.concatenate([node_j_m] * D, axis=-1)       # (R, D2)
    prod = A * node_j_rep                                       # (R, D2)

    # --- aggregate over j BEFORE the k-contraction ----------------------------
    # rows r = g*E + i*N + j -> (g*N + i, j); sublane-split reshape + reduce.
    agg_prod = prod.reshape(G * N, N, D2).sum(axis=1)           # (G*N, D2)

    # --- k-contraction: messages[., d] = sum_k agg_prod[., d*D + k] ----------
    # Tiny precomputed (D2, D) group-sum matrix, applied to G*N rows only.
    agg = jnp.dot(agg_prod, c_ref[...], preferred_element_type=jnp.float32)

    out_ref[...] = agg.astype(out_ref.dtype)


def _round_up(x, m):
    return (x + m - 1) // m * m


def _vmem_capacity_bytes():
    """Physical VMEM of one TensorCore (v7x: 64 MiB, v5e/v6e: 128 MiB)."""
    try:
        return int(pltpu.get_tpu_info().vmem_capacity_bytes)
    except Exception:
        return 128 << 20


def _block_vmem_bytes(G, N, D, F, mm_itemsize, *, edge_buffers=2,
                      const_buffers=1):
    """Rough per-step VMEM footprint (lane/sublane-padded tiles + live temps)."""
    E, D2 = N * N, D * D

    def tile(rows, cols, itemsize):
        return _round_up(rows, 8) * _round_up(cols, 128) * itemsize

    streamed = (edge_buffers * tile(G * E, F, mm_itemsize)      # edges
                + 2 * tile(G * N, D, 4)                          # nodes
                + 2 * tile(G * E, 1, mm_itemsize)                # mask
                + 2 * tile(G * N, D, 4))                         # output
    consts = const_buffers * (tile(F, D2, mm_itemsize)           # W^T
                              + tile(1, D2, 4)                   # bias
                              + tile(D2, D, 4))                  # C
    temps = (3 * tile(G * E, D2, 4)                              # A, rep, prod
             + tile(G * E, D, 4)                                 # node_j
             + tile(G * N, D2, 4))                               # agg_prod
    return streamed + consts + temps


def _pick_batches_per_block(B, N, D, F, mm_itemsize, vmem_cap_bytes,
                            prefer_even_steps=False, target_rows=1024):
    """Largest VMEM-fitting G with (8,128)-friendly blocks, >= 2 grid steps."""
    E = N * N
    valid = [g for g in range(1, B + 1)
             if B % g == 0 and (g == B or ((g * N) % 8 == 0 and (g * E) % 8 == 0))]
    budget = max(vmem_cap_bytes // 2, 4 << 20)      # ~50% of VMEM, keep headroom
    fitting = [g for g in valid
               if _block_vmem_bytes(g, N, D, F, mm_itemsize) <= budget]
    if not fitting:
        fitting = valid[:1]                          # smallest valid block
    multi = [g for g in fitting if B // g >= 2]      # keep pipelining alive
    preferred = multi or fitting
    if prefer_even_steps:                            # v7x dual-TC sharding
        even = [g for g in preferred if (B // g) % 2 == 0]
        preferred = even or preferred
    for g in preferred:                              # smallest G hitting target
        if g * E >= target_rows:
            return g
    return preferred[-1]                             # else largest preferred


def gru_aggregator(nodes, edges, mask, w_t, bias, *,
                   batches_per_block=None, use_bf16_matmul=True):
    """nodes (B,N,D), edges (B,E,F), mask (B,E,1), w_t (F,D*D), bias (D*D,)."""
    B, N, D = nodes.shape
    _, E, F = edges.shape
    assert E == N * N, "edges.shape[1] must equal n_nodes**2"
    D2 = D * D

    # bf16 inputs halve HBM->VMEM bytes on all generations and double MXU rate
    # on v6e/v7x; f32 accumulation preserved via preferred_element_type.
    # TODO(synk): fp8 edges (per-block scale folded into A) could halve the
    # edges DMA again on v7x; skipped (accuracy-budget dependent).
    mm_dtype = jnp.bfloat16 if use_bf16_matmul else edges.dtype
    mm_isz = jnp.dtype(mm_dtype).itemsize

    vmem_cap = _vmem_capacity_bytes()
    small_vmem = vmem_cap <= (64 << 20)              # v7x-class TensorCore

    if batches_per_block is not None:
        G = int(batches_per_block)
        assert B % G == 0, "batches_per_block must divide the batch size"
        assert G == B or ((G * N) % 8 == 0 and (G * E) % 8 == 0), (
            "invalid batches_per_block: block row counts must be multiples of 8 "
            "(or cover the whole batch)")
    else:
        G = _pick_batches_per_block(B, N, D, F, mm_isz, vmem_cap,
                                    prefer_even_steps=small_vmem)
    num_blocks = B // G

    # Flatten batch into the row (sublane) axis -> big tiles, lane dims unchanged.
    nodes_f = nodes.reshape(B * N, D)
    edges_f = edges.reshape(B * E, F).astype(mm_dtype)
    # Narrow mask dtype cuts the 128-lane-padded (G*E, 1) block; exact for 0/1.
    mask_f = mask.reshape(B * E, 1).astype(
        jnp.bfloat16 if use_bf16_matmul else jnp.float32)
    bias2 = bias.reshape(1, D2).astype(jnp.float32)
    w_in = w_t.astype(mm_dtype)

    # Grid-invariant group-sum matrix C[m, d] = (m // D == d); built ONCE here.
    c_mat = (jnp.arange(D2, dtype=jnp.int32)[:, None] // D
             == jnp.arange(D, dtype=jnp.int32)[None, :]).astype(jnp.float32)

    # 3rd buffer on the dominant edges stream only where the 128 MiB chips
    # (v5e/v6e) have slack; never on v7x (budget better spent on larger G).
    edge_buffers = 2
    if not small_vmem and _block_vmem_bytes(
            G, N, D, F, mm_isz, edge_buffers=3) <= vmem_cap // 2:
        edge_buffers = 3

    # Generation-aware scoped-VMEM limit: always set (v5e default is only
    # 16 MiB); cap well below physical on v7x, allow ~100 MiB on v5e/v6e.
    est = _block_vmem_bytes(G, N, D, F, mm_isz, edge_buffers=edge_buffers)
    cap = (52 << 20) if small_vmem else (100 << 20)
    vmem_limit = int(min(max(est * 3 // 2, 32 << 20), cap))

    kernel = partial(gru_agg_kernel, N=N, D=D, G=G)
    out_shape = jax.ShapeDtypeStruct((B * N, D), nodes.dtype)
    cparams = pltpu.CompilerParams(dimension_semantics=("parallel",),
                                   vmem_limit_bytes=vmem_limit)

    def make_call(with_pipeline_mode):
        def const_spec(shape):
            # W^T / bias / C never change across grid steps: single-buffer them.
            kw = {"pipeline_mode": pl.Buffered(1)} if with_pipeline_mode else {}
            return pl.BlockSpec(shape, lambda r: (0, 0), **kw)

        edge_kw = ({"pipeline_mode": pl.Buffered(edge_buffers)}
                   if with_pipeline_mode and edge_buffers != 2 else {})
        return pl.pallas_call(
            kernel,
            out_shape=out_shape,
            grid_spec=pltpu.PrefetchScalarGridSpec(
                num_scalar_prefetch=0,
                grid=(num_blocks,),
                in_specs=[
                    pl.BlockSpec((G * N, D), lambda r: (r, 0)),             # nodes
                    pl.BlockSpec((G * E, F), lambda r: (r, 0), **edge_kw),  # edges
                    pl.BlockSpec((G * E, 1), lambda r: (r, 0)),             # mask
                    const_spec((F, D2)),                                    # W^T
                    const_spec((1, D2)),                                    # bias
                    const_spec((D2, D)),                                    # C
                ],
                out_specs=pl.BlockSpec((G * N, D), lambda r: (r, 0)),
            ),
            compiler_params=cparams,
        )

    args = (nodes_f, edges_f, mask_f, w_in, bias2, c_mat)
    try:
        out_flat = make_call(True)(*args)
    except Exception:
        # pipeline_mode / pl.Buffered not supported by this jax build:
        # fall back to default (double-buffered) BlockSpecs.
        out_flat = make_call(False)(*args)

    # TODO(synk): with D < 128 the output store lane-width is sub-128 (vst.msk);
    # a lane-dense (G, N*D) output block needs an in-kernel sublane->lane
    # relayout, skipped (output traffic is N x smaller than the edge inputs).
    return out_flat.reshape(B, N, D)


def reference(nodes, edges, mask, w_t, bias):
    """Pure-JAX transcription of the PyTorch forward pass."""
    B, N, D = nodes.shape
    E = edges.shape[1]
    A = jnp.maximum(edges @ w_t + bias, 0.0)                  # (B, E, D*D)
    A = A.reshape(B * E, D, D)
    node_j = jnp.tile(nodes, (1, N, 1)).reshape(B * E, D, 1)
    messages = jnp.matmul(A, node_j).reshape(B, E, D)
    masked = messages * mask
    return masked.reshape(B, N, N, D).sum(axis=2)


if __name__ == "__main__":
    B, N, D, F = 4, 8, 8, 16          # batch, n_nodes, node_dim, nb_features
    E = N * N

    key = jax.random.PRNGKey(0)
    k_nodes, k_edges, k_mask, k_w, k_b = jax.random.split(key, 5)

    nodes = jax.random.normal(k_nodes, (B, N, D), dtype=jnp.float32)
    edges = jax.random.normal(k_edges, (B, E, F), dtype=jnp.float32)
    mask = jax.random.bernoulli(k_mask, 0.7, (B, E, 1)).astype(jnp.float32)

    # Linear(F -> D*D) parameters; weight passed pre-transposed as (F, D*D).
    w_t = (jax.random.normal(k_w, (F, D * D), dtype=jnp.float32)
           * (1.0 / jnp.sqrt(F)))
    bias = jax.random.normal(k_b, (D * D,), dtype=jnp.float32) * 0.1

    ref = reference(nodes, edges, mask, w_t, bias)

    # Default path: bf16 MXU inputs (dominant edges HBM stream halved);
    # tolerances loosened for the expected bf16 rounding, not a kernel bug.
    out = jax.block_until_ready(gru_aggregator(nodes, edges, mask, w_t, bias))
    assert out.shape == (B, N, D)
    assert jnp.allclose(out, ref, atol=1e-1, rtol=5e-2), "bf16 path mismatch"

    # Exact f32 path: tight-tolerance check of the kernel structure itself.
    out_f32 = jax.block_until_ready(
        gru_aggregator(nodes, edges, mask, w_t, bias, use_bf16_matmul=False))
    assert jnp.allclose(out_f32, ref, atol=2e-4, rtol=2e-4), "f32 path mismatch"

    print("KERNEL_OK")
</pallas_src>

<mosaic_0001>
module attributes {stable_mosaic.version = 11 : i64} {
  func.func @gru_agg_kernel(%arg0: i32, %arg1: memref<16x8xf32, #tpu.memory_space<vmem>>, %arg2: memref<128x16xbf16, #tpu.memory_space<vmem>>, %arg3: memref<128x1xbf16, #tpu.memory_space<vmem>>, %arg4: memref<16x64xbf16, #tpu.memory_space<vmem>>, %arg5: memref<1x64xf32, #tpu.memory_space<vmem>>, %arg6: memref<64x8xf32, #tpu.memory_space<vmem>>, %arg7: memref<16x8xf32, #tpu.memory_space<vmem>>) attributes {dimension_semantics = [#tpu.dimension_semantics<parallel>], iteration_bounds = array<i64: 2>, scalar_prefetch = 0 : i64, scratch_operands = 0 : i64, tpu.core_type = #tpu.core_type<tc>, window_params = [{transform_indices = @transform_0, window_bounds = array<i64: 16, 8>}, {transform_indices = @transform_1, window_bounds = array<i64: 128, 16>}, {transform_indices = @transform_2, window_bounds = array<i64: 128, 1>}, {pipeline_mode = #tpu.pipeline_mode<synchronous>, transform_indices = @transform_3, window_bounds = array<i64: 16, 64>}, {pipeline_mode = #tpu.pipeline_mode<synchronous>, transform_indices = @transform_4, window_bounds = array<i64: 1, 64>}, {pipeline_mode = #tpu.pipeline_mode<synchronous>, transform_indices = @transform_5, window_bounds = array<i64: 64, 8>}, {transform_indices = @transform_6, window_bounds = array<i64: 16, 8>}]} {
    %c0 = arith.constant 0 : index
    %c0_0 = arith.constant 0 : index
    %0 = vector.load %arg2[%c0, %c0_0] : memref<128x16xbf16, #tpu.memory_space<vmem>>, vector<128x16xbf16>
    %c0_1 = arith.constant 0 : index
    %c0_2 = arith.constant 0 : index
    %1 = vector.load %arg4[%c0_1, %c0_2] : memref<16x64xbf16, #tpu.memory_space<vmem>>, vector<16x64xbf16>
    %cst = arith.constant dense<0.000000e+00> : vector<128x64xf32>
    %2 = tpu.matmul %0, %1, %cst {dimension_numbers = #tpu.dot_dimension_numbers<[1], [0], [0], [1], [0, 0, 1, 1], [], []>} : vector<128x16xbf16>, vector<16x64xbf16>, vector<128x64xf32> -> vector<128x64xf32>
    %c0_3 = arith.constant 0 : index
    %c0_4 = arith.constant 0 : index
    %3 = vector.load %arg5[%c0_3, %c0_4] : memref<1x64xf32, #tpu.memory_space<vmem>>, vector<1x64xf32>
    %4 = vector.broadcast %3 : vector<1x64xf32> to vector<128x64xf32>
    %5 = arith.addf %2, %4 : vector<128x64xf32>
    %cst_5 = arith.constant 0.000000e+00 : f32
    %6 = vector.broadcast %cst_5 : f32 to vector<128x64xf32>
    %7 = arith.maximumf %5, %6 : vector<128x64xf32>
    %c0_6 = arith.constant 0 : index
    %c0_7 = arith.constant 0 : index
    %8 = vector.load %arg1[%c0_6, %c0_7] : memref<16x8xf32, #tpu.memory_space<vmem>>, vector<16x8xf32>
    %9 = vector.shape_cast %8 : vector<16x8xf32> to vector<2x1x8x8xf32>
    %10 = vector.shape_cast %9 : vector<2x1x8x8xf32> to vector<2x1x8x8xf32>
    %11 = vector.broadcast %10 : vector<2x1x8x8xf32> to vector<2x8x8x8xf32>
    %12 = vector.shape_cast %11 : vector<2x8x8x8xf32> to vector<128x8xf32>
    %c0_8 = arith.constant 0 : index
    %c0_9 = arith.constant 0 : index
    %13 = vector.load %arg3[%c0_8, %c0_9] : memref<128x1xbf16, #tpu.memory_space<vmem>>, vector<128x1xbf16>
    %14 = arith.extf %13 : vector<128x1xbf16> to vector<128x1xf32>
    %15 = vector.broadcast %14 : vector<128x1xf32> to vector<128x8xf32>
    %16 = arith.mulf %12, %15 : vector<128x8xf32>
    %17 = tpu.concatenate %16, %16, %16, %16, %16, %16, %16, %16 in 1 : vector<128x8xf32>, vector<128x8xf32>, vector<128x8xf32>, vector<128x8xf32>, vector<128x8xf32>, vector<128x8xf32>, vector<128x8xf32>, vector<128x8xf32> -> vector<128x64xf32>
    %18 = arith.mulf %7, %17 : vector<128x64xf32>
    %19 = vector.shape_cast %18 : vector<128x64xf32> to vector<16x8x64xf32>
    %cst_10 = arith.constant dense<0.000000e+00> : vector<16x64xf32>
    %20 = vector.multi_reduction <add>, %19, %cst_10 [1] : vector<16x8x64xf32> to vector<16x64xf32>
    %c0_11 = arith.constant 0 : index
    %c0_12 = arith.constant 0 : index
    %21 = vector.load %arg6[%c0_11, %c0_12] : memref<64x8xf32, #tpu.memory_space<vmem>>, vector<64x8xf32>
    %cst_13 = arith.constant dense<0.000000e+00> : vector<16x8xf32>
    %22 = tpu.matmul %20, %21, %cst_13 {dimension_numbers = #tpu.dot_dimension_numbers<[1], [0], [0], [1], [0, 0, 1, 1], [], []>} : vector<16x64xf32>, vector<64x8xf32>, vector<16x8xf32> -> vector<16x8xf32>
    %c0_14 = arith.constant 0 : index
    %c0_15 = arith.constant 0 : index
    %23 = vector.load %arg7[%c0_14, %c0_15] : memref<16x8xf32, #tpu.memory_space<vmem>>, vector<16x8xf32>
    tpu.vector_store %arg7[%c0_14, %c0_15], %22 {strides = array<i32>} : memref<16x8xf32, #tpu.memory_space<vmem>>, vector<16x8xf32>,
    return
  }
  func.func @transform_0(%arg0: i32) -> (i32, i32) {
    %c0_i32 = arith.constant 0 : i32
    %c0_i32_0 = arith.constant 0 : i32
    return %arg0, %c0_i32 : i32, i32
  }
  func.func @transform_1(%arg0: i32) -> (i32, i32) {
    %c0_i32 = arith.constant 0 : i32
    %c0_i32_0 = arith.constant 0 : i32
    return %arg0, %c0_i32 : i32, i32
  }
  func.func @transform_2(%arg0: i32) -> (i32, i32) {
    %c0_i32 = arith.constant 0 : i32
    %c0_i32_0 = arith.constant 0 : i32
    return %arg0, %c0_i32 : i32, i32
  }
  func.func @transform_3(%arg0: i32) -> (i32, i32) {
    %c0_i32 = arith.constant 0 : i32
    %c0_i32_0 = arith.constant 0 : i32
    %c0_i32_1 = arith.constant 0 : i32
    return %c0_i32, %c0_i32_0 : i32, i32
  }
  func.func @transform_4(%arg0: i32) -> (i32, i32) {
    %c0_i32 = arith.constant 0 : i32
    %c0_i32_0 = arith.constant 0 : i32
    %c0_i32_1 = arith.constant 0 : i32
    return %c0_i32, %c0_i32_0 : i32, i32
  }
  func.func @transform_5(%arg0: i32) -> (i32, i32) {
    %c0_i32 = arith.constant 0 : i32
    %c0_i32_0 = arith.constant 0 : i32
    %c0_i32_1 = arith.constant 0 : i32
    return %c0_i32, %c0_i32_0 : i32, i32
  }
  func.func @transform_6(%arg0: i32) -> (i32, i32) {
    %c0_i32 = arith.constant 0 : i32
    %c0_i32_0 = arith.constant 0 : i32
    return %arg0, %c0_i32 : i32, i32
  }
}

</mosaic_0001>

<llo_original>
// kernel: tpu_custom_call.1
$region0: #{tpu_custom_call.1}
  #allocation0 [shape = 'u32[]', space=smem, size = 0x4, offset = 0x4, fixed_abs, tag = 'smem constant byte address 0x4 - core index']
  #allocation1 [shape = 'u32[144,128]{1,0:T(1,128)}', space=vmem, size = 0x12000, scoped, tag = 'internal scratch']
  %s0 = inlined_call_operand.vmem [shape: f32[32,8], index: 0, kind: input, shape index: {}]
  %s1 = inlined_call_operand.vmem [shape: bf16[256,16], index: 1, kind: input, shape index: {}]
  %s2 = inlined_call_operand.vmem [shape: bf16[256,1], index: 2, kind: input, shape index: {}]
  %s3 = inlined_call_operand.vmem [shape: bf16[16,64], index: 3, kind: input, shape index: {}]
  %s4 = inlined_call_operand.vmem [shape: f32[1,64], index: 4, kind: input, shape index: {}]
  %s5 = inlined_call_operand.vmem [shape: f32[64,8], index: 5, kind: input, shape index: {}]
  %s6 = inlined_call_operand.vmem [shape: f32[32,8], index: 6, kind: output, shape index: {}]
  %s7 = sld [smem:[#allocation0]]
  $region57: #{tpu_custom_call.1} parent=0
    _
  %s9 = ssub.s32 1, %s7
  %s10 = scalar_select 0, %s9, %s7
  loop: start=0, step=1, limit=4
  $region2: #{tpu_custom_call.1} parent=0 // loop_pre_header
    _
  $region3: #{tpu_custom_call.1} parent=0 // loop_header
    %s12 = sphi 0, %s16
    %p13 = scmp.ge.s32.totalorder %s12, 4
    %s22 = sphi 0, %s24
    %s25 = sphi 0, %s22
    %s26 = sphi 0, %s25
    %s42 = sphi 0, %s26
    %s48 = sphi 0, %s50
    %s51 = sphi 0, %s48
    %s52 = sphi 0, %s51
    %s68 = sphi 0, %s52
    %s74 = sphi 0, %s76
    %s77 = sphi 0, %s74
    %s78 = sphi 0, %s77
    %s94 = sphi 0, %s78
    %s98 = sphi 0, %s98
    %s100 = sphi 0, %s98
    %s101 = sphi 0, %s100
    %s115 = sphi 0, %s101
    %s119 = sphi 0, %s119
    %s121 = sphi 0, %s119
    %s122 = sphi 0, %s121
    %s136 = sphi 0, %s122
    %s140 = sphi 0, %s140
    %s142 = sphi 0, %s140
    %s143 = sphi 0, %s142
    %s157 = sphi 0, %s143
    %s163 = sphi 0, %s165
    %s166 = sphi 0, %s163
    %s167 = sphi 0, %s166
    %s183 = sphi 0, %s167
  $region4: #{tpu_custom_call.1} parent=0 // loop_header_branch
    %15 = sbr.rel (%p13) target = $region8
  $region5: #{tpu_custom_call.1} parent=0 // loop_body
    %s17 = ssub.s32 %s12, 1
    %s18 = ssub.s32 %s12, 2
    %s19 = sadd.s32 %s12, 1
    %s20 = ssub.s32 %s12, %s19
    %p21 = scmp.eq.s32.totalorder %s20, 0
    %s23 = sadd.s32 %s22, 1
    %s24 = scalar_select %p21, %s22, %s23
    %p27 = pneg %p21
    %p28 = scmp.eq.s32.totalorder %s12, 1
    %p29 = por %p27, %p28
    %p30 = scmp.ne.s32.totalorder %s22, %s25
    %p31 = scmp.eq.s32.totalorder %s12, 0
    %p32 = por %p30, %p31
    %p33 = scmp.ne.s32.totalorder %s22, %s25
    %p34 = scmp.eq.s32.totalorder %s17, 1
    %p35 = por %p33, %p34
    %p36 = scmp.ne.s32.totalorder %s25, %s26
    %p37 = scmp.eq.s32.totalorder %s17, 0
    %p38 = por %p36, %p37
    %p39 = scmp.ne.s32.totalorder %s25, %s26
    %p40 = scmp.eq.s32.totalorder %s18, 1
    %p41 = por %p39, %p40
    %p43 = scmp.ne.s32.totalorder %s26, %s42
    %p44 = scmp.eq.s32.totalorder %s18, 0
    %p45 = por %p43, %p44
    %s46 = ssub.s32 %s12, %s19
    %p47 = scmp.eq.s32.totalorder %s46, 0
    %s49 = sadd.s32 %s48, 1
    %s50 = scalar_select %p47, %s48, %s49
    %p53 = pneg %p47
    %p54 = scmp.eq.s32.totalorder %s12, 1
    %p55 = por %p53, %p54
    %p56 = scmp.ne.s32.totalorder %s48, %s51
    %p57 = scmp.eq.s32.totalorder %s12, 0
    %p58 = por %p56, %p57
    %p59 = scmp.ne.s32.totalorder %s48, %s51
    %p60 = scmp.eq.s32.totalorder %s17, 1
    %p61 = por %p59, %p60
    %p62 = scmp.ne.s32.totalorder %s51, %s52
    %p63 = scmp.eq.s32.totalorder %s17, 0
    %p64 = por %p62, %p63
    %p65 = scmp.ne.s32.totalorder %s51, %s52
    %p66 = scmp.eq.s32.totalorder %s18, 1
    %p67 = por %p65, %p66
    %p69 = scmp.ne.s32.totalorder %s52, %s68
    %p70 = scmp.eq.s32.totalorder %s18, 0
    %p71 = por %p69, %p70
    %s72 = ssub.s32 %s12, %s19
    %p73 = scmp.eq.s32.totalorder %s72, 0
    %s75 = sadd.s32 %s74, 1
    %s76 = scalar_select %p73, %s74, %s75
    %p79 = pneg %p73
    %p80 = scmp.eq.s32.totalorder %s12, 1
    %p81 = por %p79, %p80
    %p82 = scmp.ne.s32.totalorder %s74, %s77
    %p83 = scmp.eq.s32.totalorder %s12, 0
    %p84 = por %p82, %p83
    %p85 = scmp.ne.s32.totalorder %s74, %s77
    %p86 = scmp.eq.s32.totalorder %s17, 1
    %p87 = por %p85, %p86
    %p88 = scmp.ne.s32.totalorder %s77, %s78
    %p89 = scmp.eq.s32.totalorder %s17, 0
    %p90 = por %p88, %p89
    %p91 = scmp.ne.s32.totalorder %s77, %s78
    %p92 = scmp.eq.s32.totalorder %s18, 1
    %p93 = por %p91, %p92
    %p95 = scmp.ne.s32.totalorder %s78, %s94
    %p96 = scmp.eq.s32.totalorder %s18, 0
    %p97 = por %p95, %p96
    %s99 = sadd.s32 %s98, 1
    %p102 = scmp.eq.s32.totalorder %s12, 1
    %p103 = scmp.ne.s32.totalorder %s98, %s100
    %p104 = scmp.eq.s32.totalorder %s12, 0
    %p105 = por %p103, %p104
    %p106 = scmp.ne.s32.totalorder %s98, %s100
    %p107 = scmp.eq.s32.totalorder %s17, 1
    %p108 = por %p106, %p107
    %p109 = scmp.ne.s32.totalorder %s100, %s101
    %p110 = scmp.eq.s32.totalorder %s17, 0
    %p111 = por %p109, %p110
    %p112 = scmp.ne.s32.totalorder %s100, %s101
    %p113 = scmp.eq.s32.totalorder %s18, 1
    %p114 = por %p112, %p113
    %p116 = scmp.ne.s32.totalorder %s101, %s115
    %p117 = scmp.eq.s32.totalorder %s18, 0
    %p118 = por %p116, %p117
    %s120 = sadd.s32 %s119, 1
    %p123 = scmp.eq.s32.totalorder %s12, 1
    %p124 = scmp.ne.s32.totalorder %s119, %s121
    %p125 = scmp.eq.s32.totalorder %s12, 0
    %p126 = por %p124, %p125
    %p127 = scmp.ne.s32.totalorder %s119, %s121
    %p128 = scmp.eq.s32.totalorder %s17, 1
    %p129 = por %p127, %p128
    %p130 = scmp.ne.s32.totalorder %s121, %s122
    %p131 = scmp.eq.s32.totalorder %s17, 0
    %p132 = por %p130, %p131
    %p133 = scmp.ne.s32.totalorder %s121, %s122
    %p134 = scmp.eq.s32.totalorder %s18, 1
    %p135 = por %p133, %p134
    %p137 = scmp.ne.s32.totalorder %s122, %s136
    %p138 = scmp.eq.s32.totalorder %s18, 0
    %p139 = por %p137, %p138
    %s141 = sadd.s32 %s140, 1
    %p144 = scmp.eq.s32.totalorder %s12, 1
    %p145 = scmp.ne.s32.totalorder %s140, %s142
    %p146 = scmp.eq.s32.totalorder %s12, 0
    %p147 = por %p145, %p146
    %p148 = scmp.ne.s32.totalorder %s140, %s142
    %p149 = scmp.eq.s32.totalorder %s17, 1
    %p150 = por %p148, %p149
    %p151 = scmp.ne.s32.totalorder %s142, %s143
    %p152 = scmp.eq.s32.totalorder %s17, 0
    %p153 = por %p151, %p152
    %p154 = scmp.ne.s32.totalorder %s142, %s143
    %p155 = scmp.eq.s32.totalorder %s18, 1
    %p156 = por %p154, %p155
    %p158 = scmp.ne.s32.totalorder %s143, %s157
    %p159 = scmp.eq.s32.totalorder %s18, 0
    %p160 = por %p158, %p159
    %s161 = ssub.s32 %s12, %s19
    %p162 = scmp.eq.s32.totalorder %s161, 0
    %s164 = sadd.s32 %s163, 1
    %s165 = scalar_select %p162, %s163, %s164
    %p168 = pneg %p162
    %p169 = scmp.eq.s32.totalorder %s12, 1
    %p170 = por %p168, %p169
    %p171 = scmp.ne.s32.totalorder %s163, %s166
    %p172 = scmp.eq.s32.totalorder %s12, 0
    %p173 = por %p171, %p172
    %p174 = scmp.ne.s32.totalorder %s163, %s166
    %p175 = scmp.eq.s32.totalorder %s17, 1
    %p176 = por %p174, %p175
    %p177 = scmp.ne.s32.totalorder %s166, %s167
    %p178 = scmp.eq.s32.totalorder %s17, 0
    %p179 = por %p177, %p178
    %p180 = scmp.ne.s32.totalorder %s166, %s167
    %p181 = scmp.eq.s32.totalorder %s18, 1
    %p182 = por %p180, %p181
    %p184 = scmp.ne.s32.totalorder %s167, %s183
    %p185 = scmp.eq.s32.totalorder %s18, 0
    %p186 = por %p184, %p185
    %p187 = scmp.le.s32.totalorder 1, %s12
    %p188 = scmp.lt.s32.totalorder %s12, 3
    %p189 = pnand %p187, %p188
    %p190 = pneg %p189
    // Predicated region
    $region9: #{tpu_custom_call.1} parent=5 // pred_check
      _
    $region10: #{tpu_custom_call.1} parent=5 // pred_check_branch
      %192 = sbr.rel (%p189) target = $region12
    $region11: #{tpu_custom_call.1} parent=5 // pred_region
      %s193 = ssub.s32 %s12, 1
      // Predicated region
      $region13: #{tpu_custom_call.1} parent=11 // pred_check
        %p194 = pneg %p111
      $region14: #{tpu_custom_call.1} parent=11 // pred_check_branch
        %196 = sbr.rel (%p194) target = $region16
      $region15: #{tpu_custom_call.1} parent=11 // pred_region
        _
      $region16: #{tpu_custom_call.1} parent=11 // pred_fallthru
        _
      // Predicated region
      $region17: #{tpu_custom_call.1} parent=11 // pred_check
        %p197 = pneg %p132
      $region18: #{tpu_custom_call.1} parent=11 // pred_check_branch
        %199 = sbr.rel (%p197) target = $region20
      $region19: #{tpu_custom_call.1} parent=11 // pred_region
        _
      $region20: #{tpu_custom_call.1} parent=11 // pred_fallthru
        _
      // Predicated region
      $region21: #{tpu_custom_call.1} parent=11 // pred_check
        %p200 = pneg %p153
      $region22: #{tpu_custom_call.1} parent=11 // pred_check_branch
        %202 = sbr.rel (%p200) target = $region24
      $region23: #{tpu_custom_call.1} parent=11 // pred_region
        _
      $region24: #{tpu_custom_call.1} parent=11 // pred_fallthru
        _
    $region12: #{tpu_custom_call.1} parent=5 // pred_fallthru
      _
    %p203 = scmp.lt.s32.totalorder %s12, 2
    // Predicated region
    $region25: #{tpu_custom_call.1} parent=5 // pred_check
      %p204 = pneg %p203
    $region26: #{tpu_custom_call.1} parent=5 // pred_check_branch
      %206 = sbr.rel (%p204) target = $region28
    $region27: #{tpu_custom_call.1} parent=5 // pred_region
      // Predicated region
      $region29: #{tpu_custom_call.1} parent=27 // pred_check
        %p207 = pneg %p32
      $region30: #{tpu_custom_call.1} parent=27 // pred_check_branch
        %209 = sbr.rel (%p207) target = $region32
      $region31: #{tpu_custom_call.1} parent=27 // pred_region
        %s210 = smul.u32 2, %s12
        %p211 = scmp.lt.s32.totalorder %s210, 3
        %s212 = scalar_select %p211, %s210, 3
        %s213 = smul.addr %s212, 8
        %s214 = scalar_lea.vmem %s0, %s213
        %s215 = smul.u32 2, %s12
      $region32: #{tpu_custom_call.1} parent=27 // pred_fallthru
        _
      // Predicated region
      $region33: #{tpu_custom_call.1} parent=27 // pred_check
        %p216 = pneg %p58
      $region34: #{tpu_custom_call.1} parent=27 // pred_check_branch
        %218 = sbr.rel (%p216) target = $region36
      $region35: #{tpu_custom_call.1} parent=27 // pred_region
        %s219 = smul.u32 16, %s12
        %p220 = scmp.lt.s32.totalorder %s219, 31
        %s221 = scalar_select %p220, %s219, 31
        %s222 = smul.addr %s221, 4
        %s223 = scalar_lea.vmem %s1, %s222
        %s224 = smul.u32 16, %s12
      $region36: #{tpu_custom_call.1} parent=27 // pred_fallthru
        _
      // Predicated region
      $region37: #{tpu_custom_call.1} parent=27 // pred_check
        %p225 = pneg %p84
      $region38: #{tpu_custom_call.1} parent=27 // pred_check_branch
        %227 = sbr.rel (%p225) target = $region40
      $region39: #{tpu_custom_call.1} parent=27 // pred_region
        %s228 = smul.u32 16, %s12
        %p229 = scmp.lt.s32.totalorder %s228, 31
        %s230 = scalar_select %p229, %s228, 31
        %s231 = smul.addr %s230, 4
        %s232 = scalar_lea.vmem %s2, %s231
        %s233 = smul.u32 16, %s12
      $region40: #{tpu_custom_call.1} parent=27 // pred_fallthru
        _
    $region28: #{tpu_custom_call.1} parent=5 // pred_fallthru
      _
    %p234 = scmp.le.s32.totalorder 1, %s12
    %p235 = scmp.lt.s32.totalorder %s12, 3
    %p236 = pnand %p234, %p235
    %p237 = pneg %p236
    // Predicated region
    $region41: #{tpu_custom_call.1} parent=5 // pred_check
      _
    $region42: #{tpu_custom_call.1} parent=5 // pred_check_branch
      %239 = sbr.rel (%p236) target = $region44
    $region43: #{tpu_custom_call.1} parent=5 // pred_region
      %s240 = ssub.s32 %s12, 1
      %s241 = smul.u32 2, %s17
      %p242 = scmp.lt.s32.totalorder %s241, 3
      %s243 = scalar_select %p242, %s241, 3
      %s244 = smul.addr %s243, 8
      %s245 = scalar_lea.vmem %s0, %s244
      %p246 = pneg %p38
      %p247 = pneg %p35
      %s248 = smul.u32 16, %s17
      %p249 = scmp.lt.s32.totalorder %s248, 31
      %s250 = scalar_select %p249, %s248, 31
      %s251 = smul.addr %s250, 4
      %s252 = scalar_lea.vmem %s1, %s251
      %p253 = pneg %p64
      %p254 = pneg %p61
      %s255 = smul.u32 16, %s17
      %p256 = scmp.lt.s32.totalorder %s255, 31
      %s257 = scalar_select %p256, %s255, 31
      %s258 = smul.addr %s257, 4
      %s259 = scalar_lea.vmem %s2, %s258
      %p260 = pneg %p90
      %p261 = pneg %p87
      %p262 = pneg %p111
      %p263 = pneg %p108
      %p264 = pneg %p132
      %p265 = pneg %p129
      %p266 = pneg %p153
      %p267 = pneg %p150
      %p268 = pneg %p179
      %p269 = pneg %p176
      %s270 = smul.u32 2, %s17
      %p271 = scmp.lt.s32.totalorder %s270, 3
      %s272 = scalar_select %p271, %s270, 3
      %s273 = smul.addr %s272, 8
      %s274 = scalar_lea.vmem %s6, %s273
      %s275 = smul.u32 2, %s17
      %p276 = scmp.lt.s32.totalorder %s275, 3
      %s277 = scalar_select %p276, %s275, 3
      %s278 = smul.addr %s277, 8
      %s279 = scalar_lea.vmem %s0, %s278
      %s280 = smul.u32 2, %s17
      %s281 = smul.u32 16, %s17
      %p282 = scmp.lt.s32.totalorder %s281, 31
      %s283 = scalar_select %p282, %s281, 31
      %s284 = smul.addr %s283, 4
      %s285 = scalar_lea.vmem %s1, %s284
      %s286 = smul.u32 16, %s17
      %s287 = smul.u32 16, %s17
      %p288 = scmp.lt.s32.totalorder %s287, 31
      %s289 = scalar_select %p288, %s287, 31
      %s290 = smul.addr %s289, 4
      %s291 = scalar_lea.vmem %s2, %s290
      %s292 = smul.u32 16, %s17
      %s293 = smul.u32 2, %s17
      %p294 = scmp.lt.s32.totalorder %s293, 3
      %s295 = scalar_select %p294, %s293, 3
      %s296 = smul.addr %s295, 8
      %s297 = scalar_lea.vmem %s6, %s296
      %s298 = smul.u32 2, %s17
      %v300 = vld [vmem:[%s285] sm:$0xf]
      %v301 = vld [vmem:[%s285 + $0x4] sm:$0xf]
      %v302 = vld [vmem:[%s285 + $0x8] sm:$0xf]
      %v303 = vld [vmem:[%s285 + $0xc] sm:$0xf]
      %v304 = vld [vmem:[%s285 + $0x10] sm:$0xf]
      %v305 = vld [vmem:[%s285 + $0x14] sm:$0xf]
      %v306 = vld [vmem:[%s285 + $0x18] sm:$0xf]
      %v307 = vld [vmem:[%s285 + $0x1c] sm:$0xf]
      %v308 = vld [vmem:[%s285 + $0x20] sm:$0xf]
      %v309 = vld [vmem:[%s285 + $0x24] sm:$0xf]
      %v310 = vld [vmem:[%s285 + $0x28] sm:$0xf]
      %v311 = vld [vmem:[%s285 + $0x2c] sm:$0xf]
      %v312 = vld [vmem:[%s285 + $0x30] sm:$0xf]
      %v313 = vld [vmem:[%s285 + $0x34] sm:$0xf]
      %v314 = vld [vmem:[%s285 + $0x38] sm:$0xf]
      %v315 = vld [vmem:[%s285 + $0x3c] sm:$0xf]
      %v316 = vld [vmem:[%s3] sm:$0xf]
      %v317 = vld [vmem:[%s3 + $0x4] sm:$0xf]
      %v318 = vld [vmem:[%s4] sm:$0x1]
      %v320 = vlaneseq
      %v321 = vshrl.u32 %v320, 7
      %v322 = vsub.s32 0, %v321
      %v323 = vrot.slane %v318, %v322
      %v341 = vunpack.c.l.b16 %v300
      %v342 = vunpack.c.l.b16 %v301
      %v343 = vunpack.c.l.b16 %v302
      %v344 = vunpack.c.l.b16 %v303
      %v345 = vunpack.c.l.b16 %v304
      %v346 = vunpack.c.l.b16 %v305
      %v347 = vunpack.c.l.b16 %v306
      %v348 = vunpack.c.l.b16 %v307
      %v349 = vunpack.c.l.b16 %v308
      %v350 = vunpack.c.l.b16 %v309
      %v351 = vunpack.c.l.b16 %v310
      %v352 = vunpack.c.l.b16 %v311
      %v353 = vunpack.c.l.b16 %v312
      %v354 = vunpack.c.l.b16 %v313
      %v355 = vunpack.c.l.b16 %v314
      %v356 = vunpack.c.l.b16 %v315
      %v357 = vpack.c.b16 %v342, %v341
      %v358 = vpack.c.b16 %v344, %v343
      %v359 = vpack.c.b16 %v346, %v345
      %v360 = vpack.c.b16 %v348, %v347
      %v361 = vpack.c.b16 %v350, %v349
      %v362 = vpack.c.b16 %v352, %v351
      %v363 = vpack.c.b16 %v354, %v353
      %v364 = vpack.c.b16 %v356, %v355
      %v367 = vunpack.c.l.b16 %v316
      %v368 = vunpack.c.l.b16 %v317
      %v369 = vpack.c.b16 %v368, %v367
      %vm371 = vcmask 130048
      %v373 = vsel %vm371, %v357, 0
      %v376 = vsel %vm371, %v358, 0
      %v379 = vsel %vm371, %v359, 0
      %v382 = vsel %vm371, %v360, 0
      %v385 = vsel %vm371, %v361, 0
      %v388 = vsel %vm371, %v362, 0
      %v391 = vsel %vm371, %v363, 0
      %v394 = vsel %vm371, %v364, 0
      %396 = vmatprep.subr.bf16.mxu0 0
      %397 = vmatpush1.bf16.msra.mxu0 0
      %398 = vmatprep.subr.bf16.mxu0 0
      %399 = vmatpush1.bf16.msra.mxu0 0
      %400 = vmatprep.subr.bf16.mxu0 0
      %401 = vmatpush1.bf16.msra.mxu0 0
      %402 = vmatprep.subr.bf16.mxu0 0
      %403 = vmatpush1.bf16.msra.mxu0 0
      %404 = vmatprep.subr.bf16.mxu0 0
      %405 = vmatpush1.bf16.msra.mxu0 0
      %406 = vmatprep.subr.bf16.mxu0 0
      %407 = vmatpush1.bf16.msra.mxu0 0
      %408 = vmatprep.subr.bf16.mxu0 0
      %409 = vmatpush1.bf16.msra.mxu0 0
      %410 = vmatprep.subr.bf16.mxu0 0
      %411 = vmatpush1.bf16.msra.mxu0 %v369
      %412 = vmatprep.subr.bf16.mxu0 0
      %413 = vmatpush2.bf16.msra.mxu0 0
      %414 = vmatprep.subr.bf16.mxu0 0
      %415 = vmatpush2.bf16.msra.mxu0 0
      %416 = vmatprep.subr.bf16.mxu0 0
      %417 = vmatpush2.bf16.msra.mxu0 0
      %418 = vmatprep.subr.bf16.mxu0 0
      %419 = vmatpush2.bf16.msra.mxu0 0
      %420 = vmatprep.subr.bf16.mxu0 0
      %421 = vmatpush2.bf16.msra.mxu0 0
      %422 = vmatprep.subr.bf16.mxu0 0
      %423 = vmatpush2.bf16.msra.mxu0 0
      %424 = vmatprep.subr.bf16.mxu0 0
      %425 = vmatpush2.bf16.msra.mxu0 0
      %426 = vmatprep.subr.bf16.mxu0 0
      %427 = vmatpush2.bf16.msra.mxu0 0
      %428 = vmatprep.mubr.bf16.mxu0 0
      %429 = vmatmul.mubr.bf16.gmra.mxu0 %v373
      %v430 = vpop.f32.mrf.mxu0
      %v431 = vadd.f32 %v323, %v430
      %v432 = vpop.f32.mrf.mxu0
      %v433 = vpop.f32.mrf.mxu0
      %v434 = vadd.f32 %v323, %v433
      %v435 = vpop.f32.mrf.mxu0
      %436 = vmatprep.mubr.bf16.mxu0 0
      %437 = vmatmul.mubr.bf16.gmra.mxu0 %v376
      %v438 = vpop.f32.mrf.mxu0
      %v439 = vadd.f32 %v323, %v438
      %v440 = vpop.f32.mrf.mxu0
      %v441 = vpop.f32.mrf.mxu0
      %v442 = vadd.f32 %v323, %v441
      %v443 = vpop.f32.mrf.mxu0
      %444 = vmatprep.mubr.bf16.mxu0 0
      %445 = vmatmul.mubr.bf16.gmra.mxu0 %v379
      %v446 = vpop.f32.mrf.mxu0
      %v447 = vadd.f32 %v323, %v446
      %v448 = vpop.f32.mrf.mxu0
      %v449 = vpop.f32.mrf.mxu0
      %v450 = vadd.f32 %v323, %v449
      %v451 = vpop.f32.mrf.mxu0
      %452 = vmatprep.mubr.bf16.mxu0 0
      %453 = vmatmul.mubr.bf16.gmra.mxu0 %v382
      %v454 = vpop.f32.mrf.mxu0
      %v455 = vadd.f32 %v323, %v454
      %v456 = vpop.f32.mrf.mxu0
      %v457 = vpop.f32.mrf.mxu0
      %v458 = vadd.f32 %v323, %v457
      %v459 = vpop.f32.mrf.mxu0
      %460 = vmatprep.mubr.bf16.mxu0 0
      %461 = vmatmul.mubr.bf16.gmra.mxu0 %v385
      %v462 = vpop.f32.mrf.mxu0
      %v463 = vadd.f32 %v323, %v462
      %v464 = vpop.f32.mrf.mxu0
      %v465 = vpop.f32.mrf.mxu0
      %v466 = vadd.f32 %v323, %v465
      %v467 = vpop.f32.mrf.mxu0
      %468 = vmatprep.mubr.bf16.mxu0 0
      %469 = vmatmul.mubr.bf16.gmra.mxu0 %v388
      %v470 = vpop.f32.mrf.mxu0
      %v471 = vadd.f32 %v323, %v470
      %v472 = vpop.f32.mrf.mxu0
      %v473 = vpop.f32.mrf.mxu0
      %v474 = vadd.f32 %v323, %v473
      %v475 = vpop.f32.mrf.mxu0
      %476 = vmatprep.mubr.bf16.mxu0 0
      %477 = vmatmul.mubr.bf16.gmra.mxu0 %v391
      %v478 = vpop.f32.mrf.mxu0
      %v479 = vadd.f32 %v323, %v478
      %v480 = vpop.f32.mrf.mxu0
      %v481 = vpop.f32.mrf.mxu0
      %v482 = vadd.f32 %v323, %v481
      %v483 = vpop.f32.mrf.mxu0
      %484 = vmatprep.mubr.bf16.mxu0 0
      %485 = vmatmul.mubr.bf16.gmra.mxu0 %v394
      %v486 = vpop.f32.mrf.mxu0
      %v487 = vadd.f32 %v323, %v486
      %v488 = vpop.f32.mrf.mxu0
      %v489 = vpop.f32.mrf.mxu0
      %v490 = vadd.f32 %v323, %v489
      %v491 = vpop.f32.mrf.mxu0
      %492 = vdwg.mxu0
      %v493 = vmax.f32 %v431, 0.0
      %v494 = vmax.f32 %v434, 0.0
      %v495 = vmax.f32 %v439, 0.0
      %v496 = vmax.f32 %v442, 0.0
      %v497 = vmax.f32 %v447, 0.0
      %v498 = vmax.f32 %v450, 0.0
      %v499 = vmax.f32 %v455, 0.0
      %v500 = vmax.f32 %v458, 0.0
      %v501 = vmax.f32 %v463, 0.0
      %v502 = vmax.f32 %v466, 0.0
      %v503 = vmax.f32 %v471, 0.0
      %v504 = vmax.f32 %v474, 0.0
      %v505 = vmax.f32 %v479, 0.0
      %v506 = vmax.f32 %v482, 0.0
      %v507 = vmax.f32 %v487, 0.0
      %v508 = vmax.f32 %v490, 0.0
      %v509 = vld [vmem:[%s279] sm:$0xff]
      %v510 = vld [vmem:[%s279 + $0x8] sm:$0xff]
      %v511 = vld [vmem:[%s291] sm:$0xf]
      %v512 = vld [vmem:[%s291 + $0x4] sm:$0xf]
      %v513 = vld [vmem:[%s291 + $0x8] sm:$0xf]
      %v514 = vld [vmem:[%s291 + $0xc] sm:$0xf]
      %v515 = vld [vmem:[%s291 + $0x10] sm:$0xf]
      %v516 = vld [vmem:[%s291 + $0x14] sm:$0xf]
      %v517 = vld [vmem:[%s291 + $0x18] sm:$0xf]
      %v518 = vld [vmem:[%s291 + $0x1c] sm:$0xf]
      %v519 = vld [vmem:[%s291 + $0x20] sm:$0xf]
      %v520 = vld [vmem:[%s291 + $0x24] sm:$0xf]
      %v521 = vld [vmem:[%s291 + $0x28] sm:$0xf]
      %v522 = vld [vmem:[%s291 + $0x2c] sm:$0xf]
      %v523 = vld [vmem:[%s291 + $0x30] sm:$0xf]
      %v524 = vld [vmem:[%s291 + $0x34] sm:$0xf]
      %v525 = vld [vmem:[%s291 + $0x38] sm:$0xf]
      %v526 = vld [vmem:[%s291 + $0x3c] sm:$0xf]
      %v527 = vunpack.c.l.bf16 %v511
      %v528 = vunpack.c.l.bf16 %v512
      %v529 = vunpack.c.l.bf16 %v513
      %v530 = vunpack.c.l.bf16 %v514
      %v531 = vunpack.c.l.bf16 %v515
      %v532 = vunpack.c.l.bf16 %v516
      %v533 = vunpack.c.l.bf16 %v517
      %v534 = vunpack.c.l.bf16 %v518
      %v535 = vunpack.c.l.bf16 %v519
      %v536 = vunpack.c.l.bf16 %v520
      %v537 = vunpack.c.l.bf16 %v521
      %v538 = vunpack.c.l.bf16 %v522
      %v539 = vunpack.c.l.bf16 %v523
      %v540 = vunpack.c.l.bf16 %v524
      %v541 = vunpack.c.l.bf16 %v525
      %v542 = vunpack.c.l.bf16 %v526
      %544 = vset.pattern.permute.xlu0 0
      %545 = vperm.xlu0 %544, %v527
      %v546 = vpop.permute.xlu0 %545
      %549 = vset.pattern.permute.xlu0 0
      %550 = vperm.xlu0 %549, %v528
      %v551 = vpop.permute.xlu0 %550
      %554 = vset.pattern.permute.xlu0 0
      %555 = vperm.xlu0 %554, %v529
      %v556 = vpop.permute.xlu0 %555
      %559 = vset.pattern.permute.xlu0 0
      %560 = vperm.xlu0 %559, %v530
      %v561 = vpop.permute.xlu0 %560
      %564 = vset.pattern.permute.xlu0 0
      %565 = vperm.xlu0 %564, %v531
      %v566 = vpop.permute.xlu0 %565
      %569 = vset.pattern.permute.xlu0 0
      %570 = vperm.xlu0 %569, %v532
      %v571 = vpop.permute.xlu0 %570
      %574 = vset.pattern.permute.xlu0 0
      %575 = vperm.xlu0 %574, %v533
      %v576 = vpop.permute.xlu0 %575
      %579 = vset.pattern.permute.xlu0 0
      %580 = vperm.xlu0 %579, %v534
      %v581 = vpop.permute.xlu0 %580
      %584 = vset.pattern.permute.xlu0 0
      %585 = vperm.xlu0 %584, %v535
      %v586 = vpop.permute.xlu0 %585
      %589 = vset.pattern.permute.xlu0 0
      %590 = vperm.xlu0 %589, %v536
      %v591 = vpop.permute.xlu0 %590
      %594 = vset.pattern.permute.xlu0 0
      %595 = vperm.xlu0 %594, %v537
      %v596 = vpop.permute.xlu0 %595
      %599 = vset.pattern.permute.xlu0 0
      %600 = vperm.xlu0 %599, %v538
      %v601 = vpop.permute.xlu0 %600
      %604 = vset.pattern.permute.xlu0 0
      %605 = vperm.xlu0 %604, %v539
      %v606 = vpop.permute.xlu0 %605
      %609 = vset.pattern.permute.xlu0 0
      %610 = vperm.xlu0 %609, %v540
      %v611 = vpop.permute.xlu0 %610
      %614 = vset.pattern.permute.xlu0 0
      %615 = vperm.xlu0 %614, %v541
      %v616 = vpop.permute.xlu0 %615
      %619 = vset.pattern.permute.xlu0 0
      %620 = vperm.xlu0 %619, %v542
      %v621 = vpop.permute.xlu0 %620
      %v623 = vmul.f32 %v509, %v546
      %v624 = vmul.f32 %v509, %v551
      %v625 = vmul.f32 %v509, %v556
      %v626 = vmul.f32 %v509, %v561
      %v627 = vmul.f32 %v509, %v566
      %v628 = vmul.f32 %v509, %v571
      %v629 = vmul.f32 %v509, %v576
      %v630 = vmul.f32 %v509, %v581
      %v631 = vmul.f32 %v510, %v586
      %v632 = vmul.f32 %v510, %v591
      %v633 = vmul.f32 %v510, %v596
      %v634 = vmul.f32 %v510, %v601
      %v635 = vmul.f32 %v510, %v606
      %v636 = vmul.f32 %v510, %v611
      %v637 = vmul.f32 %v510, %v616
      %v638 = vmul.f32 %v510, %v621
      %655 = vrot.lane.b32.xlu0 %v623, 8
      %v656 = vpop.permute.xlu0 %655
      %657 = vrot.lane.b32.xlu0 %v624, 8
      %v658 = vpop.permute.xlu0 %657
      %659 = vrot.lane.b32.xlu0 %v625, 8
      %v660 = vpop.permute.xlu0 %659
      %661 = vrot.lane.b32.xlu0 %v626, 8
      %v662 = vpop.permute.xlu0 %661
      %663 = vrot.lane.b32.xlu0 %v627, 8
      %v664 = vpop.permute.xlu0 %663
      %665 = vrot.lane.b32.xlu0 %v628, 8
      %v666 = vpop.permute.xlu0 %665
      %667 = vrot.lane.b32.xlu0 %v629, 8
      %v668 = vpop.permute.xlu0 %667
      %669 = vrot.lane.b32.xlu0 %v630, 8
      %v670 = vpop.permute.xlu0 %669
      %671 = vrot.lane.b32.xlu0 %v631, 8
      %v672 = vpop.permute.xlu0 %671
      %673 = vrot.lane.b32.xlu0 %v632, 8
      %v674 = vpop.permute.xlu0 %673
      %675 = vrot.lane.b32.xlu0 %v633, 8
      %v676 = vpop.permute.xlu0 %675
      %677 = vrot.lane.b32.xlu0 %v634, 8
      %v678 = vpop.permute.xlu0 %677
      %679 = vrot.lane.b32.xlu0 %v635, 8
      %v680 = vpop.permute.xlu0 %679
      %681 = vrot.lane.b32.xlu0 %v636, 8
      %v682 = vpop.permute.xlu0 %681
      %683 = vrot.lane.b32.xlu0 %v637, 8
      %v684 = vpop.permute.xlu0 %683
      %685 = vrot.lane.b32.xlu0 %v638, 8
      %v686 = vpop.permute.xlu0 %685
      %703 = vrot.lane.b32.xlu0 %v623, 16
      %v704 = vpop.permute.xlu0 %703
      %705 = vrot.lane.b32.xlu0 %v624, 16
      %v706 = vpop.permute.xlu0 %705
      %707 = vrot.lane.b32.xlu0 %v625, 16
      %v708 = vpop.permute.xlu0 %707
      %709 = vrot.lane.b32.xlu0 %v626, 16
      %v710 = vpop.permute.xlu0 %709
      %711 = vrot.lane.b32.xlu0 %v627, 16
      %v712 = vpop.permute.xlu0 %711
      %713 = vrot.lane.b32.xlu0 %v628, 16
      %v714 = vpop.permute.xlu0 %713
      %715 = vrot.lane.b32.xlu0 %v629, 16
      %v716 = vpop.permute.xlu0 %715
      %717 = vrot.lane.b32.xlu0 %v630, 16
      %v718 = vpop.permute.xlu0 %717
      %719 = vrot.lane.b32.xlu0 %v631, 16
      %v720 = vpop.permute.xlu0 %719
      %721 = vrot.lane.b32.xlu0 %v632, 16
      %v722 = vpop.permute.xlu0 %721
      %723 = vrot.lane.b32.xlu0 %v633, 16
      %v724 = vpop.permute.xlu0 %723
      %725 = vrot.lane.b32.xlu0 %v634, 16
      %v726 = vpop.permute.xlu0 %725
      %727 = vrot.lane.b32.xlu0 %v635, 16
      %v728 = vpop.permute.xlu0 %727
      %729 = vrot.lane.b32.xlu0 %v636, 16
      %v730 = vpop.permute.xlu0 %729
      %731 = vrot.lane.b32.xlu0 %v637, 16
      %v732 = vpop.permute.xlu0 %731
      %733 = vrot.lane.b32.xlu0 %v638, 16
      %v734 = vpop.permute.xlu0 %733
      %751 = vrot.lane.b32.xlu0 %v623, 24
      %v752 = vpop.permute.xlu0 %751
      %753 = vrot.lane.b32.xlu0 %v624, 24
      %v754 = vpop.permute.xlu0 %753
      %755 = vrot.lane.b32.xlu0 %v625, 24
      %v756 = vpop.permute.xlu0 %755
      %757 = vrot.lane.b32.xlu0 %v626, 24
      %v758 = vpop.permute.xlu0 %757
      %759 = vrot.lane.b32.xlu0 %v627, 24
      %v760 = vpop.permute.xlu0 %759
      %761 = vrot.lane.b32.xlu0 %v628, 24
      %v762 = vpop.permute.xlu0 %761
      %763 = vrot.lane.b32.xlu0 %v629, 24
      %v764 = vpop.permute.xlu0 %763
      %765 = vrot.lane.b32.xlu0 %v630, 24
      %v766 = vpop.permute.xlu0 %765
      %767 = vrot.lane.b32.xlu0 %v631, 24
      %v768 = vpop.permute.xlu0 %767
      %769 = vrot.lane.b32.xlu0 %v632, 24
      %v770 = vpop.permute.xlu0 %769
      %771 = vrot.lane.b32.xlu0 %v633, 24
      %v772 = vpop.permute.xlu0 %771
      %773 = vrot.lane.b32.xlu0 %v634, 24
      %v774 = vpop.permute.xlu0 %773
      %775 = vrot.lane.b32.xlu0 %v635, 24
      %v776 = vpop.permute.xlu0 %775
      %777 = vrot.lane.b32.xlu0 %v636, 24
      %v778 = vpop.permute.xlu0 %777
      %779 = vrot.lane.b32.xlu0 %v637, 24
      %v780 = vpop.permute.xlu0 %779
      %781 = vrot.lane.b32.xlu0 %v638, 24
      %v782 = vpop.permute.xlu0 %781
      %799 = vrot.lane.b32.xlu0 %v623, 32
      %v800 = vpop.permute.xlu0 %799
      %801 = vrot.lane.b32.xlu0 %v624, 32
      %v802 = vpop.permute.xlu0 %801
      %803 = vrot.lane.b32.xlu0 %v625, 32
      %v804 = vpop.permute.xlu0 %803
      %805 = vrot.lane.b32.xlu0 %v626, 32
      %v806 = vpop.permute.xlu0 %805
      %807 = vrot.lane.b32.xlu0 %v627, 32
      %v808 = vpop.permute.xlu0 %807
      %809 = vrot.lane.b32.xlu0 %v628, 32
      %v810 = vpop.permute.xlu0 %809
      %811 = vrot.lane.b32.xlu0 %v629, 32
      %v812 = vpop.permute.xlu0 %811
      %813 = vrot.lane.b32.xlu0 %v630, 32
      %v814 = vpop.permute.xlu0 %813
      %815 = vrot.lane.b32.xlu0 %v631, 32
      %v816 = vpop.permute.xlu0 %815
      %817 = vrot.lane.b32.xlu0 %v632, 32
      %v818 = vpop.permute.xlu0 %817
      %819 = vrot.lane.b32.xlu0 %v633, 32
      %v820 = vpop.permute.xlu0 %819
      %821 = vrot.lane.b32.xlu0 %v634, 32
      %v822 = vpop.permute.xlu0 %821
      %823 = vrot.lane.b32.xlu0 %v635, 32
      %v824 = vpop.permute.xlu0 %823
      %825 = vrot.lane.b32.xlu0 %v636, 32
      %v826 = vpop.permute.xlu0 %825
      %827 = vrot.lane.b32.xlu0 %v637, 32
      %v828 = vpop.permute.xlu0 %827
      %829 = vrot.lane.b32.xlu0 %v638, 32
      %v830 = vpop.permute.xlu0 %829
      %847 = vrot.lane.b32.xlu0 %v623, 40
      %v848 = vpop.permute.xlu0 %847
      %849 = vrot.lane.b32.xlu0 %v624, 40
      %v850 = vpop.permute.xlu0 %849
      %851 = vrot.lane.b32.xlu0 %v625, 40
      %v852 = vpop.permute.xlu0 %851
      %853 = vrot.lane.b32.xlu0 %v626, 40
      %v854 = vpop.permute.xlu0 %853
      %855 = vrot.lane.b32.xlu0 %v627, 40
      %v856 = vpop.permute.xlu0 %855
      %857 = vrot.lane.b32.xlu0 %v628, 40
      %v858 = vpop.permute.xlu0 %857
      %859 = vrot.lane.b32.xlu0 %v629, 40
      %v860 = vpop.permute.xlu0 %859
      %861 = vrot.lane.b32.xlu0 %v630, 40
      %v862 = vpop.permute.xlu0 %861
      %863 = vrot.lane.b32.xlu0 %v631, 40
      %v864 = vpop.permute.xlu0 %863
      %865 = vrot.lane.b32.xlu0 %v632, 40
      %v866 = vpop.permute.xlu0 %865
      %867 = vrot.lane.b32.xlu0 %v633, 40
      %v868 = vpop.permute.xlu0 %867
      %869 = vrot.lane.b32.xlu0 %v634, 40
      %v870 = vpop.permute.xlu0 %869
      %871 = vrot.lane.b32.xlu0 %v635, 40
      %v872 = vpop.permute.xlu0 %871
      %873 = vrot.lane.b32.xlu0 %v636, 40
      %v874 = vpop.permute.xlu0 %873
      %875 = vrot.lane.b32.xlu0 %v637, 40
      %v876 = vpop.permute.xlu0 %875
      %877 = vrot.lane.b32.xlu0 %v638, 40
      %v878 = vpop.permute.xlu0 %877
      %895 = vrot.lane.b32.xlu0 %v623, 48
      %v896 = vpop.permute.xlu0 %895
      %897 = vrot.lane.b32.xlu0 %v624, 48
      %v898 = vpop.permute.xlu0 %897
      %899 = vrot.lane.b32.xlu0 %v625, 48
      %v900 = vpop.permute.xlu0 %899
      %901 = vrot.lane.b32.xlu0 %v626, 48
      %v902 = vpop.permute.xlu0 %901
      %903 = vrot.lane.b32.xlu0 %v627, 48
      %v904 = vpop.permute.xlu0 %903
      %905 = vrot.lane.b32.xlu0 %v628, 48
      %v906 = vpop.permute.xlu0 %905
      %907 = vrot.lane.b32.xlu0 %v629, 48
      %v908 = vpop.permute.xlu0 %907
      %909 = vrot.lane.b32.xlu0 %v630, 48
      %v910 = vpop.permute.xlu0 %909
      %911 = vrot.lane.b32.xlu0 %v631, 48
      %v912 = vpop.permute.xlu0 %911
      %913 = vrot.lane.b32.xlu0 %v632, 48
      %v914 = vpop.permute.xlu0 %913
      %915 = vrot.lane.b32.xlu0 %v633, 48
      %v916 = vpop.permute.xlu0 %915
      %917 = vrot.lane.b32.xlu0 %v634, 48
      %v918 = vpop.permute.xlu0 %917
      %919 = vrot.lane.b32.xlu0 %v635, 48
      %v920 = vpop.permute.xlu0 %919
      %921 = vrot.lane.b32.xlu0 %v636, 48
      %v922 = vpop.permute.xlu0 %921
      %923 = vrot.lane.b32.xlu0 %v637, 48
      %v924 = vpop.permute.xlu0 %923
      %925 = vrot.lane.b32.xlu0 %v638, 48
      %v926 = vpop.permute.xlu0 %925
      %943 = vrot.lane.b32.xlu0 %v623, 56
      %v944 = vpop.permute.xlu0 %943
      %945 = vrot.lane.b32.xlu0 %v624, 56
      %v946 = vpop.permute.xlu0 %945
      %947 = vrot.lane.b32.xlu0 %v625, 56
      %v948 = vpop.permute.xlu0 %947
      %949 = vrot.lane.b32.xlu0 %v626, 56
      %v950 = vpop.permute.xlu0 %949
      %951 = vrot.lane.b32.xlu0 %v627, 56
      %v952 = vpop.permute.xlu0 %951
      %953 = vrot.lane.b32.xlu0 %v628, 56
      %v954 = vpop.permute.xlu0 %953
      %955 = vrot.lane.b32.xlu0 %v629, 56
      %v956 = vpop.permute.xlu0 %955
      %957 = vrot.lane.b32.xlu0 %v630, 56
      %v958 = vpop.permute.xlu0 %957
      %959 = vrot.lane.b32.xlu0 %v631, 56
      %v960 = vpop.permute.xlu0 %959
      %961 = vrot.lane.b32.xlu0 %v632, 56
      %v962 = vpop.permute.xlu0 %961
      %963 = vrot.lane.b32.xlu0 %v633, 56
      %v964 = vpop.permute.xlu0 %963
      %965 = vrot.lane.b32.xlu0 %v634, 56
      %v966 = vpop.permute.xlu0 %965
      %967 = vrot.lane.b32.xlu0 %v635, 56
      %v968 = vpop.permute.xlu0 %967
      %969 = vrot.lane.b32.xlu0 %v636, 56
      %v970 = vpop.permute.xlu0 %969
      %971 = vrot.lane.b32.xlu0 %v637, 56
      %v972 = vpop.permute.xlu0 %971
      %973 = vrot.lane.b32.xlu0 %v638, 56
      %v974 = vpop.permute.xlu0 %973
      %vm991 = vcmask 64512
      %v992 = vsel %vm991, %v623, %v656
      %v993 = vsel %vm991, %v624, %v658
      %v994 = vsel %vm991, %v625, %v660
      %v995 = vsel %vm991, %v626, %v662
      %v996 = vsel %vm991, %v627, %v664
      %v997 = vsel %vm991, %v628, %v666
      %v998 = vsel %vm991, %v629, %v668
      %v999 = vsel %vm991, %v630, %v670
      %v1000 = vsel %vm991, %v631, %v672
      %v1001 = vsel %vm991, %v632, %v674
      %v1002 = vsel %vm991, %v633, %v676
      %v1003 = vsel %vm991, %v634, %v678
      %v1004 = vsel %vm991, %v635, %v680
      %v1005 = vsel %vm991, %v636, %v682
      %v1006 = vsel %vm991, %v637, %v684
      %v1007 = vsel %vm991, %v638, %v686
      %v1008 = vsel %vm371, %v992, %v704
      %v1009 = vsel %vm371, %v993, %v706
      %v1010 = vsel %vm371, %v994, %v708
      %v1011 = vsel %vm371, %v995, %v710
      %v1012 = vsel %vm371, %v996, %v712
      %v1013 = vsel %vm371, %v997, %v714
      %v1014 = vsel %vm371, %v998, %v716
      %v1015 = vsel %vm371, %v999, %v718
      %v1016 = vsel %vm371, %v1000, %v720
      %v1017 = vsel %vm371, %v1001, %v722
      %v1018 = vsel %vm371, %v1002, %v724
      %v1019 = vsel %vm371, %v1003, %v726
      %v1020 = vsel %vm371, %v1004, %v728
      %v1021 = vsel %vm371, %v1005, %v730
      %v1022 = vsel %vm371, %v1006, %v732
      %v1023 = vsel %vm371, %v1007, %v734
      %vm1024 = vcmask 195584
      %v1025 = vsel %vm1024, %v1008, %v752
      %v1026 = vsel %vm1024, %v1009, %v754
      %v1027 = vsel %vm1024, %v1010, %v756
      %v1028 = vsel %vm1024, %v1011, %v758
      %v1029 = vsel %vm1024, %v1012, %v760
      %v1030 = vsel %vm1024, %v1013, %v762
      %v1031 = vsel %vm1024, %v1014, %v764
      %v1032 = vsel %vm1024, %v1015, %v766
      %v1033 = vsel %vm1024, %v1016, %v768
      %v1034 = vsel %vm1024, %v1017, %v770
      %v1035 = vsel %vm1024, %v1018, %v772
      %v1036 = vsel %vm1024, %v1019, %v774
      %v1037 = vsel %vm1024, %v1020, %v776
      %v1038 = vsel %vm1024, %v1021, %v778
      %v1039 = vsel %vm1024, %v1022, %v780
      %v1040 = vsel %vm1024, %v1023, %v782
      %vm1041 = vcmask 261120
      %v1042 = vsel %vm1041, %v1025, %v800
      %v1043 = vsel %vm1041, %v1026, %v802
      %v1044 = vsel %vm1041, %v1027, %v804
      %v1045 = vsel %vm1041, %v1028, %v806
      %v1046 = vsel %vm1041, %v1029, %v808
      %v1047 = vsel %vm1041, %v1030, %v810
      %v1048 = vsel %vm1041, %v1031, %v812
      %v1049 = vsel %vm1041, %v1032, %v814
      %v1050 = vsel %vm1041, %v1033, %v816
      %v1051 = vsel %vm1041, %v1034, %v818
      %v1052 = vsel %vm1041, %v1035, %v820
      %v1053 = vsel %vm1041, %v1036, %v822
      %v1054 = vsel %vm1041, %v1037, %v824
      %v1055 = vsel %vm1041, %v1038, %v826
      %v1056 = vsel %vm1041, %v1039, %v828
      %v1057 = vsel %vm1041, %v1040, %v830
      %vm1058 = vcmask 326656
      %v1059 = vsel %vm1058, %v1042, %v848
      %v1060 = vsel %vm1058, %v1043, %v850
      %v1061 = vsel %vm1058, %v1044, %v852
      %v1062 = vsel %vm1058, %v1045, %v854
      %v1063 = vsel %vm1058, %v1046, %v856
      %v1064 = vsel %vm1058, %v1047, %v858
      %v1065 = vsel %vm1058, %v1048, %v860
      %v1066 = vsel %vm1058, %v1049, %v862
      %v1067 = vsel %vm1058, %v1050, %v864
      %v1068 = vsel %vm1058, %v1051, %v866
      %v1069 = vsel %vm1058, %v1052, %v868
      %v1070 = vsel %vm1058, %v1053, %v870
      %v1071 = vsel %vm1058, %v1054, %v872
      %v1072 = vsel %vm1058, %v1055, %v874
      %v1073 = vsel %vm1058, %v1056, %v876
      %v1074 = vsel %vm1058, %v1057, %v878
      %vm1075 = vcmask 392192
      %v1076 = vsel %vm1075, %v1059, %v896
      %v1077 = vsel %vm1075, %v1060, %v898
      %v1078 = vsel %vm1075, %v1061, %v900
      %v1079 = vsel %vm1075, %v1062, %v902
      %v1080 = vsel %vm1075, %v1063, %v904
      %v1081 = vsel %vm1075, %v1064, %v906
      %v1082 = vsel %vm1075, %v1065, %v908
      %v1083 = vsel %vm1075, %v1066, %v910
      %v1084 = vsel %vm1075, %v1067, %v912
      %v1085 = vsel %vm1075, %v1068, %v914
      %v1086 = vsel %vm1075, %v1069, %v916
      %v1087 = vsel %vm1075, %v1070, %v918
      %v1088 = vsel %vm1075, %v1071, %v920
      %v1089 = vsel %vm1075, %v1072, %v922
      %v1090 = vsel %vm1075, %v1073, %v924
      %v1091 = vsel %vm1075, %v1074, %v926
      %vm1092 = vcmask 457728
      %v1093 = vsel %vm1092, %v1076, %v944
      %v1094 = vsel %vm1092, %v1077, %v946
      %v1095 = vsel %vm1092, %v1078, %v948
      %v1096 = vsel %vm1092, %v1079, %v950
      %v1097 = vsel %vm1092, %v1080, %v952
      %v1098 = vsel %vm1092, %v1081, %v954
      %v1099 = vsel %vm1092, %v1082, %v956
      %v1100 = vsel %vm1092, %v1083, %v958
      %v1101 = vsel %vm1092, %v1084, %v960
      %v1102 = vsel %vm1092, %v1085, %v962
      %v1103 = vsel %vm1092, %v1086, %v964
      %v1104 = vsel %vm1092, %v1087, %v966
      %v1105 = vsel %vm1092, %v1088, %v968
      %v1106 = vsel %vm1092, %v1089, %v970
      %v1107 = vsel %vm1092, %v1090, %v972
      %v1108 = vsel %vm1092, %v1091, %v974
      %v1109 = vmul.f32 %v493, %v1093
      %v1110 = vmul.f32 %v494, %v1094
      %v1111 = vmul.f32 %v495, %v1095
      %v1112 = vmul.f32 %v496, %v1096
      %v1113 = vmul.f32 %v497, %v1097
      %v1114 = vmul.f32 %v498, %v1098
      %v1115 = vmul.f32 %v499, %v1099
      %v1116 = vmul.f32 %v500, %v1100
      %v1117 = vmul.f32 %v501, %v1101
      %v1118 = vmul.f32 %v502, %v1102
      %v1119 = vmul.f32 %v503, %v1103
      %v1120 = vmul.f32 %v504, %v1104
      %v1121 = vmul.f32 %v505, %v1105
      %v1122 = vmul.f32 %v506, %v1106
      %v1123 = vmul.f32 %v507, %v1107
      %v1124 = vmul.f32 %v508, %v1108
      %vm1125 = vcmask 523264
      %v1126 = vsel %vm1125, %v1109, 0.0
      %v1127 = vrot.slane %v1126, 4
      %v1128 = vadd.f32 %v1126, %v1127
      %v1129 = vrot.slane %v1128, 2
      %v1130 = vadd.f32 %v1128, %v1129
      %v1131 = vrot.slane %v1130, 1
      %v1132 = vadd.f32 %v1130, %v1131
      %v1133 = vsel %vm1125, %v1110, 0.0
      %v1134 = vrot.slane %v1133, 4
      %v1135 = vadd.f32 %v1133, %v1134
      %v1136 = vrot.slane %v1135, 2
      %v1137 = vadd.f32 %v1135, %v1136
      %v1138 = vrot.slane %v1137, 1
      %v1139 = vadd.f32 %v1137, %v1138
      %v1140 = vsel %vm1125, %v1111, 0.0
      %v1141 = vrot.slane %v1140, 4
      %v1142 = vadd.f32 %v1140, %v1141
      %v1143 = vrot.slane %v1142, 2
      %v1144 = vadd.f32 %v1142, %v1143
      %v1145 = vrot.slane %v1144, 1
      %v1146 = vadd.f32 %v1144, %v1145
      %v1147 = vsel %vm1125, %v1112, 0.0
      %v1148 = vrot.slane %v1147, 4
      %v1149 = vadd.f32 %v1147, %v1148
      %v1150 = vrot.slane %v1149, 2
      %v1151 = vadd.f32 %v1149, %v1150
      %v1152 = vrot.slane %v1151, 1
      %v1153 = vadd.f32 %v1151, %v1152
      %v1154 = vsel %vm1125, %v1113, 0.0
      %v1155 = vrot.slane %v1154, 4
      %v1156 = vadd.f32 %v1154, %v1155
      %v1157 = vrot.slane %v1156, 2
      %v1158 = vadd.f32 %v1156, %v1157
      %v1159 = vrot.slane %v1158, 1
      %v1160 = vadd.f32 %v1158, %v1159
      %v1161 = vsel %vm1125, %v1114, 0.0
      %v1162 = vrot.slane %v1161, 4
      %v1163 = vadd.f32 %v1161, %v1162
      %v1164 = vrot.slane %v1163, 2
      %v1165 = vadd.f32 %v1163, %v1164
      %v1166 = vrot.slane %v1165, 1
      %v1167 = vadd.f32 %v1165, %v1166
      %v1168 = vsel %vm1125, %v1115, 0.0
      %v1169 = vrot.slane %v1168, 4
      %v1170 = vadd.f32 %v1168, %v1169
      %v1171 = vrot.slane %v1170, 2
      %v1172 = vadd.f32 %v1170, %v1171
      %v1173 = vrot.slane %v1172, 1
      %v1174 = vadd.f32 %v1172, %v1173
      %v1175 = vsel %vm1125, %v1116, 0.0
      %v1176 = vrot.slane %v1175, 4
      %v1177 = vadd.f32 %v1175, %v1176
      %v1178 = vrot.slane %v1177, 2
      %v1179 = vadd.f32 %v1177, %v1178
      %v1180 = vrot.slane %v1179, 1
      %v1181 = vadd.f32 %v1179, %v1180
      %v1182 = vsel %vm1125, %v1117, 0.0
      %v1183 = vrot.slane %v1182, 4
      %v1184 = vadd.f32 %v1182, %v1183
      %v1185 = vrot.slane %v1184, 2
      %v1186 = vadd.f32 %v1184, %v1185
      %v1187 = vrot.slane %v1186, 1
      %v1188 = vadd.f32 %v1186, %v1187
      %v1189 = vsel %vm1125, %v1118, 0.0
      %v1190 = vrot.slane %v1189, 4
      %v1191 = vadd.f32 %v1189, %v1190
      %v1192 = vrot.slane %v1191, 2
      %v1193 = vadd.f32 %v1191, %v1192
      %v1194 = vrot.slane %v1193, 1
      %v1195 = vadd.f32 %v1193, %v1194
      %v1196 = vsel %vm1125, %v1119, 0.0
      %v1197 = vrot.slane %v1196, 4
      %v1198 = vadd.f32 %v1196, %v1197
      %v1199 = vrot.slane %v1198, 2
      %v1200 = vadd.f32 %v1198, %v1199
      %v1201 = vrot.slane %v1200, 1
      %v1202 = vadd.f32 %v1200, %v1201
      %v1203 = vsel %vm1125, %v1120, 0.0
      %v1204 = vrot.slane %v1203, 4
      %v1205 = vadd.f32 %v1203, %v1204
      %v1206 = vrot.slane %v1205, 2
      %v1207 = vadd.f32 %v1205, %v1206
      %v1208 = vrot.slane %v1207, 1
      %v1209 = vadd.f32 %v1207, %v1208
      %v1210 = vsel %vm1125, %v1121, 0.0
      %v1211 = vrot.slane %v1210, 4
      %v1212 = vadd.f32 %v1210, %v1211
      %v1213 = vrot.slane %v1212, 2
      %v1214 = vadd.f32 %v1212, %v1213
      %v1215 = vrot.slane %v1214, 1
      %v1216 = vadd.f32 %v1214, %v1215
      %v1217 = vsel %vm1125, %v1122, 0.0
      %v1218 = vrot.slane %v1217, 4
      %v1219 = vadd.f32 %v1217, %v1218
      %v1220 = vrot.slane %v1219, 2
      %v1221 = vadd.f32 %v1219, %v1220
      %v1222 = vrot.slane %v1221, 1
      %v1223 = vadd.f32 %v1221, %v1222
      %v1224 = vsel %vm1125, %v1123, 0.0
      %v1225 = vrot.slane %v1224, 4
      %v1226 = vadd.f32 %v1224, %v1225
      %v1227 = vrot.slane %v1226, 2
      %v1228 = vadd.f32 %v1226, %v1227
      %v1229 = vrot.slane %v1228, 1
      %v1230 = vadd.f32 %v1228, %v1229
      %v1231 = vsel %vm1125, %v1124, 0.0
      %v1232 = vrot.slane %v1231, 4
      %v1233 = vadd.f32 %v1231, %v1232
      %v1234 = vrot.slane %v1233, 2
      %v1235 = vadd.f32 %v1233, %v1234
      %v1236 = vrot.slane %v1235, 1
      %v1237 = vadd.f32 %v1235, %v1236
      %v1238 = vld [vmem:[%s5] sm:$0xff]
      %v1239 = vld [vmem:[%s5 + $0x8] sm:$0xff]
      %v1240 = vld [vmem:[%s5 + $0x10] sm:$0xff]
      %v1241 = vld [vmem:[%s5 + $0x18] sm:$0xff]
      %v1242 = vld [vmem:[%s5 + $0x20] sm:$0xff]
      %v1243 = vld [vmem:[%s5 + $0x28] sm:$0xff]
      %v1244 = vld [vmem:[%s5 + $0x30] sm:$0xff]
      %v1245 = vld [vmem:[%s5 + $0x38] sm:$0xff]
      %vm1262 = vcmask 1041409
      %v1263 = vsel %vm1262, %v1139, %v1132
      %vm1264 = vcmask 1042434
      %v1265 = vsel %vm1264, %v1146, %v1263
      %vm1266 = vcmask 1043459
      %v1267 = vsel %vm1266, %v1153, %v1265
      %vm1268 = vcmask 1044484
      %v1269 = vsel %vm1268, %v1160, %v1267
      %vm1270 = vcmask 1045509
      %v1271 = vsel %vm1270, %v1167, %v1269
      %vm1272 = vcmask 1046534
      %v1273 = vsel %vm1272, %v1174, %v1271
      %vm1274 = vcmask 1047559
      %v1275 = vsel %vm1274, %v1181, %v1273
      %v1276 = vsel %vm1262, %v1195, %v1188
      %v1277 = vsel %vm1264, %v1202, %v1276
      %v1278 = vsel %vm1266, %v1209, %v1277
      %v1279 = vsel %vm1268, %v1216, %v1278
      %v1280 = vsel %vm1270, %v1223, %v1279
      %v1281 = vsel %vm1272, %v1230, %v1280
      %v1282 = vsel %vm1274, %v1237, %v1281
      %v1283 = vsel %vm1125, %v1275, 0
      %v1285 = vsel %vm1125, %v1282, 0
      %1287 = vmatprep.subr.mxu0 0.0
      %1288 = vmatpush1.msra.mxu0 0.0
      %1289 = vmatprep.subr.mxu0 0.0
      %1290 = vmatpush1.msra.mxu0 0.0
      %1291 = vmatprep.subr.mxu0 0.0
      %1292 = vmatpush1.msra.mxu0 0.0
      %1293 = vmatprep.subr.mxu0 0.0
      %1294 = vmatpush1.msra.mxu0 0.0
      %1295 = vmatprep.subr.mxu0 0.0
      %1296 = vmatpush1.msra.mxu0 0.0
      %1297 = vmatprep.subr.mxu0 0.0
      %1298 = vmatpush1.msra.mxu0 0.0
      %1299 = vmatprep.subr.mxu0 0.0
      %1300 = vmatpush1.msra.mxu0 0.0
      %1301 = vmatprep.subr.mxu0 0.0
      %1302 = vmatpush1.msra.mxu0 0.0
      %1303 = vmatprep.subr.mxu0 0.0
      %1304 = vmatpush1.msra.mxu0 %v1245
      %1305 = vmatprep.subr.mxu0 0.0
      %1306 = vmatpush1.msra.mxu0 %v1244
      %1307 = vmatprep.subr.mxu0 0.0
      %1308 = vmatpush1.msra.mxu0 %v1243
      %1309 = vmatprep.subr.mxu0 0.0
      %1310 = vmatpush1.msra.mxu0 %v1242
      %1311 = vmatprep.subr.mxu0 0.0
      %1312 = vmatpush1.msra.mxu0 %v1241
      %1313 = vmatprep.subr.mxu0 0.0
      %1314 = vmatpush1.msra.mxu0 %v1240
      %1315 = vmatprep.subr.mxu0 0.0
      %1316 = vmatpush1.msra.mxu0 %v1239
      %1317 = vmatprep.subr.mxu0 0.0
      %1318 = vmatpush1.msra.mxu0 %v1238
      %1319 = vmatprep.subr.mxu0 0.0
      %1320 = vmatpush2.msra.mxu0 0.0
      %1321 = vmatprep.subr.mxu0 0.0
      %1322 = vmatpush2.msra.mxu0 0.0
      %1323 = vmatprep.subr.mxu0 0.0
      %1324 = vmatpush2.msra.mxu0 0.0
      %1325 = vmatprep.subr.mxu0 0.0
      %1326 = vmatpush2.msra.mxu0 0.0
      %1327 = vmatprep.subr.mxu0 0.0
      %1328 = vmatpush2.msra.mxu0 0.0
      %1329 = vmatprep.subr.mxu0 0.0
      %1330 = vmatpush2.msra.mxu0 0.0
      %1331 = vmatprep.subr.mxu0 0.0
      %1332 = vmatpush2.msra.mxu0 0.0
      %1333 = vmatprep.subr.mxu0 0.0
      %1334 = vmatpush2.msra.mxu0 0.0
      %1335 = vmatprep.subr.mxu0 0.0
      %1336 = vmatpush2.msra.mxu0 0.0
      %1337 = vmatprep.subr.mxu0 0.0
      %1338 = vmatpush2.msra.mxu0 0.0
      %1339 = vmatprep.subr.mxu0 0.0
      %1340 = vmatpush2.msra.mxu0 0.0
      %1341 = vmatprep.subr.mxu0 0.0
      %1342 = vmatpush2.msra.mxu0 0.0
      %1343 = vmatprep.subr.mxu0 0.0
      %1344 = vmatpush2.msra.mxu0 0.0
      %1345 = vmatprep.subr.mxu0 0.0
      %1346 = vmatpush2.msra.mxu0 0.0
      %1347 = vmatprep.subr.mxu0 0.0
      %1348 = vmatpush2.msra.mxu0 0.0
      %1349 = vmatprep.subr.mxu0 0.0
      %1350 = vmatpush2.msra.mxu0 0.0
      %1351 = vmatprep.mubr.f32.mxu0 0.0
      %1352 = vmatmul.mubr.f32.gmra.mxu0 %v1283
      %v1353 = vpop.f32.mrf.mxu0
      %v1354 = vadd.f32 0.0, %v1353
      %v1355 = vpop.f32.mrf.mxu0
      %1356 = vmatprep.mubr.f32.mxu0 0.0
      %1357 = vmatmul.mubr.f32.gmra.mxu0 %v1285
      %v1358 = vpop.f32.mrf.mxu0
      %v1359 = vadd.f32 0.0, %v1358
      %v1360 = vpop.f32.mrf.mxu0
      %1361 = vdwg.mxu0
      %1362 = vst.msk [vmem:[%s297] sm:$0xff] %vm991, %v1354
      %1363 = vst.msk [vmem:[%s297 + $0x8] sm:$0xff] %vm991, %v1359
      %s1364 = smul.u32 2, %s17
      %p1365 = scmp.lt.s32.totalorder %s1364, 3
      %s1366 = scalar_select %p1365, %s1364, 3
      %s1367 = smul.addr %s1366, 8
      %s1368 = scalar_lea.vmem %s6, %s1367
      // Predicated region
      $region45: #{tpu_custom_call.1} parent=43 // pred_check
        %p1369 = pneg %p176
      $region46: #{tpu_custom_call.1} parent=43 // pred_check_branch
        %1371 = sbr.rel (%p1369) target = $region48
      $region47: #{tpu_custom_call.1} parent=43 // pred_region
        %s1372 = smul.u32 2, %s17
      $region48: #{tpu_custom_call.1} parent=43 // pred_fallthru
        _
    $region44: #{tpu_custom_call.1} parent=5 // pred_fallthru
      _
    %p1373 = scmp.le.s32.totalorder 2, %s12
    // Predicated region
    $region49: #{tpu_custom_call.1} parent=5 // pred_check
      %p1374 = pneg %p1373
    $region50: #{tpu_custom_call.1} parent=5 // pred_check_branch
      %1376 = sbr.rel (%p1374) target = $region52
    $region51: #{tpu_custom_call.1} parent=5 // pred_region
      %s1377 = ssub.s32 %s12, 2
      // Predicated region
      $region53: #{tpu_custom_call.1} parent=51 // pred_check
        %p1378 = pneg %p182
      $region54: #{tpu_custom_call.1} parent=51 // pred_check_branch
        %1380 = sbr.rel (%p1378) target = $region56
      $region55: #{tpu_custom_call.1} parent=51 // pred_region
        %s1381 = smul.u32 2, %s18
        %p1382 = scmp.lt.s32.totalorder %s1381, 3
        %s1383 = scalar_select %p1382, %s1381, 3
        %s1384 = smul.addr %s1383, 8
        %s1385 = scalar_lea.vmem %s6, %s1384
      $region56: #{tpu_custom_call.1} parent=51 // pred_fallthru
        _
    $region52: #{tpu_custom_call.1} parent=5 // pred_fallthru
      _
  $region6: #{tpu_custom_call.1} parent=0 // loop_footer
    %s16 = sadd.s32 1, %s12
  $region7: #{tpu_custom_call.1} parent=0 // loop_footer_branch
    %11 = sbr.rel target = $region3
  $region8: #{tpu_custom_call.1} parent=0 // loop_exit
    _

</llo_original>
